<compile_context>
chip_gen: v5e
topology: v5e:2x2
jax: 0.10.0
libtpu: 0.0.40
codegen_flags: <defaults>
</compile_context>

<pallas_src>
import math
import numpy as np
import jax
import jax.numpy as jnp
from jax.experimental import pallas as pl
from jax.experimental.pallas import tpu as pltpu


# ----------------------------------------------------------------------------
# Gaussian coefficients (compile-time constants, match GaussianSmoothing).
# The 2D kernel is outer(g, g)/sum(outer) == outer(gn, gn) with gn = g/g.sum(),
# so the smoothing is applied separably (horizontal pass then vertical pass).
# ----------------------------------------------------------------------------
def gaussian_1d(kernel_size, sigma=1.0):
    ax = np.arange(kernel_size, dtype=np.float64)
    mean = (kernel_size - 1) / 2.0
    g = (1.0 / (sigma * math.sqrt(2.0 * math.pi))) * np.exp(
        -((ax - mean) / sigma) ** 2 / 2.0)
    return (g / g.sum()).astype(np.float32)


def gaussian_kernel_2d(kernel_size, sigma=1.0):
    ax = np.arange(kernel_size, dtype=np.float64)
    mean = (kernel_size - 1) / 2.0
    g1 = (1.0 / (sigma * math.sqrt(2.0 * math.pi))) * np.exp(
        -((ax - mean) / sigma) ** 2 / 2.0)
    k = np.outer(g1, g1)
    return (k / k.sum()).astype(np.float32)


# ----------------------------------------------------------------------------
# Pallas kernel: one image per grid step, everything lane-dense 2D.
#   xp5_ref : (H+4, (W+4)*Cin)   reflect-pad-2 input, lanes = w-major/c-minor
#   w1_ref  : (W*Cin, W*P)       kron(I_W, w1*s1)
#   w2b_ref : (3, W*P, W*P)      banded 3x3 conv weights, one band per dy
#   w3_ref  : (W*P, W*Cout)      kron(I_W, w3*s3)
#   wsl/wsh : (W*Cin, W*Cout)    kron(I_W, shortcut weights, BN folded)
#   biases  : (1, W*P)/(1, W*Cout) channel biases tiled across W
#   o_ref   : (H, W*Cout)        lane-dense output slab
# ----------------------------------------------------------------------------
def make_bottleneck_kernel(H, W, Cin, P, Cout, g3, g5):
    WC = W * Cin
    WP = W * P

    def kernel(xp5_ref, w1_ref, b1_ref, w2b_ref, b2_ref, w3_ref,
               wsl_ref, wsh_ref, bf_ref, o_ref):
        xp5 = xp5_ref[...]                                  # (H+4, (W+4)*Cin)

        # raw x and the reflect-pad-1 view are lane/sublane slices of xp5
        # (interior of a reflect pad-2 == reflect pad-1)
        x = xp5[2:H + 2, 2 * Cin:(W + 2) * Cin]             # (H, W*Cin)

        # ---- conv1 (1x1, BN folded, block-diagonal weight) + ReLU ----------
        h1 = jnp.dot(x, w1_ref[...], preferred_element_type=jnp.float32)
        h1 = jnp.maximum(h1 + b1_ref[...], 0.0)             # (H, W*P)

        # ---- conv2 (3x3, pad=1, stride=1, BN folded) + ReLU ----------------
        # horizontal zero padding folded into the banded weights; vertical
        # padding is a single lane-dense sublane concat of two zero rows.
        zrow = jnp.zeros((1, WP), jnp.float32)
        h1v = jnp.concatenate([zrow, h1, zrow], axis=0)     # (H+2, W*P)
        acc = jnp.zeros((H, WP), jnp.float32)
        for dy in range(3):                                 # 3 accumulating dots
            acc = acc + jnp.dot(h1v[dy:dy + H, :], w2b_ref[dy],
                                preferred_element_type=jnp.float32)
        h2 = jnp.maximum(acc + b2_ref[...], 0.0)            # (H, W*P)

        # ---- conv3 (1x1, BN folded; its bias is merged into bf) ------------
        h3 = jnp.dot(h2, w3_ref[...],
                     preferred_element_type=jnp.float32)    # (H, W*Cout)

        # ---- separable Gaussian branches (dx taps = lane shifts by Cin*dx) --
        xp3 = xp5[1:H + 3, Cin:(W + 3) * Cin]               # (H+2, (W+2)*Cin)
        t3 = (float(g3[0]) * xp3[:, 0:WC]
              + float(g3[1]) * xp3[:, Cin:Cin + WC]
              + float(g3[2]) * xp3[:, 2 * Cin:2 * Cin + WC])        # (H+2, W*Cin)
        img_l = (float(g3[0]) * t3[0:H, :]
                 + float(g3[1]) * t3[1:H + 1, :]
                 + float(g3[2]) * t3[2:H + 2, :])                   # (H, W*Cin)

        t5 = float(g5[0]) * xp5[:, 0:WC]
        for dx in range(1, 5):
            t5 = t5 + float(g5[dx]) * xp5[:, dx * Cin:dx * Cin + WC]  # (H+4, W*Cin)
        sm5 = float(g5[0]) * t5[0:H, :]
        for dy in range(1, 5):
            sm5 = sm5 + float(g5[dy]) * t5[dy:dy + H, :]             # (H, W*Cin)
        img_h = x - sm5

        # ---- shortcut 1x1 convs: two accumulating block-diag dots (no concat)
        sc = (jnp.dot(img_l, wsl_ref[...], preferred_element_type=jnp.float32)
              + jnp.dot(img_h, wsh_ref[...], preferred_element_type=jnp.float32))

        # ---- residual add + merged biases + ReLU; lane-dense (W*Cout) store --
        o_ref[...] = jnp.maximum(h3 + sc + bf_ref[...], 0.0)

    return kernel


# ----------------------------------------------------------------------------
# Wrapper: host-side BN folding, block-diag/banded weight packing, single
# reflect pad + lane-dense flatten, one pallas_call over the batch.
# ----------------------------------------------------------------------------
def bottleneck_forward(x_nchw, params):
    N, Cin, H, W = x_nchw.shape
    assert H >= 3 and W >= 3, "reflect pad-2 requires H, W >= 3"
    P = params["w1"].shape[1]
    Cout = params["w3"].shape[1]

    g3 = gaussian_1d(3, 1.0)
    g5 = gaussian_1d(5, 1.0)

    # ---- fold BN scales into conv weights (host-side, numpy) ----------------
    w1f = np.asarray(params["w1"] * params["s1"])           # (Cin, P)
    w2f = np.asarray(params["w2"] * params["s2"][0])        # (3, 3, P, P)
    w3f = np.asarray(params["w3"] * params["s3"])           # (P, Cout)
    wslf = np.asarray(params["wsl"] * params["ssl"])        # (Cin, Cout)
    wshf = np.asarray(params["wsh"] * params["ssh"])        # (Cin, Cout)

    # block-diagonal 1x1 weights so the dots stay in the lane-dense layout
    eyeW = np.eye(W, dtype=np.float32)
    W1big = jnp.asarray(np.kron(eyeW, w1f))                 # (W*Cin, W*P)
    W3big = jnp.asarray(np.kron(eyeW, w3f))                 # (W*P, W*Cout)
    Wslb = jnp.asarray(np.kron(eyeW, wslf))                 # (W*Cin, W*Cout)
    Wshb = jnp.asarray(np.kron(eyeW, wshf))                 # (W*Cin, W*Cout)

    # banded 3x3 conv weights: one (W*P, W*P) band per dy offset; horizontal
    # zero padding is realized by dropping out-of-range (w+dx-1) blocks.
    W2band = np.zeros((3, W * P, W * P), np.float32)
    for dy in range(3):
        for dx in range(3):
            for w in range(W):
                w_in = w + dx - 1
                if 0 <= w_in < W:
                    W2band[dy, w_in * P:(w_in + 1) * P, w * P:(w + 1) * P] = \
                        w2f[dy, dx]
    W2band = jnp.asarray(W2band)

    # channel biases tiled across W (lane-dense), final biases pre-summed
    b1t = jnp.tile(params["b1"], (1, W))                                  # (1, W*P)
    b2t = jnp.tile(params["b2"], (1, W))                                  # (1, W*P)
    bft = jnp.tile(params["b3"] + params["bsl"] + params["bsh"], (1, W))  # (1, W*Cout)

    # NCHW -> NHWC, single reflect pad-2, lane-dense flatten (glue)
    x = jnp.transpose(x_nchw, (0, 2, 3, 1)).astype(jnp.float32)
    xp5 = jnp.pad(x, ((0, 0), (2, 2), (2, 2), (0, 0)), mode="reflect")
    xp5f = xp5.reshape(N, H + 4, (W + 4) * Cin)

    kern = make_bottleneck_kernel(H, W, Cin, P, Cout, g3, g5)

    # constant index maps -> weights/biases stay VMEM-resident across steps
    const = lambda shape: pl.BlockSpec(shape, lambda n: (0,) * len(shape))

    out = pl.pallas_call(
        kern,
        out_shape=jax.ShapeDtypeStruct((N, H, W * Cout), jnp.float32),
        grid=(N,),
        in_specs=[
            pl.BlockSpec((None, H + 4, (W + 4) * Cin), lambda n: (n, 0, 0)),
            const((W * Cin, W * P)),           # W1big
            const((1, W * P)),                 # b1t
            const((3, W * P, W * P)),          # W2band
            const((1, W * P)),                 # b2t
            const((W * P, W * Cout)),          # W3big
            const((W * Cin, W * Cout)),        # Wslb
            const((W * Cin, W * Cout)),        # Wshb
            const((1, W * Cout)),              # merged bias (b3+bsl+bsh) tiled
        ],
        out_specs=pl.BlockSpec((None, H, W * Cout), lambda n: (n, 0, 0)),
        compiler_params=pltpu.CompilerParams(
            dimension_semantics=("parallel",)),
    )(xp5f, W1big, b1t, W2band, b2t, W3big, Wslb, Wshb, bft)

    out_nchw = jnp.transpose(out.reshape(N, H, W, Cout), (0, 3, 1, 2))
    print("bottleneck input", tuple(out_nchw.shape))   # mirrors the torch print
    return out_nchw


# ----------------------------------------------------------------------------
# Pure-JAX reference (unfused / unfolded math, 2D Gaussians) for a sanity check
# ----------------------------------------------------------------------------
def bottleneck_reference(x_nchw, params):
    x = jnp.transpose(x_nchw, (0, 2, 3, 1)).astype(jnp.float32)
    N, H, W, Cin = x.shape
    g3 = gaussian_kernel_2d(3, 1.0)
    g5 = gaussian_kernel_2d(5, 1.0)

    h1 = jnp.maximum(jnp.einsum("nhwc,cp->nhwp", x, params["w1"])
                     * params["s1"] + params["b1"], 0.0)
    hp = jnp.pad(h1, ((0, 0), (1, 1), (1, 1), (0, 0)))
    h2 = 0.0
    for dy in range(3):
        for dx in range(3):
            h2 = h2 + jnp.einsum("nhwp,pq->nhwq",
                                 hp[:, dy:dy + H, dx:dx + W, :],
                                 params["w2"][dy, dx])
    h2 = jnp.maximum(h2 * params["s2"] + params["b2"], 0.0)
    h3 = jnp.einsum("nhwp,pq->nhwq", h2, params["w3"]) * params["s3"] + params["b3"]

    xp3 = jnp.pad(x, ((0, 0), (1, 1), (1, 1), (0, 0)), mode="reflect")
    xp5 = jnp.pad(x, ((0, 0), (2, 2), (2, 2), (0, 0)), mode="reflect")
    img_l = 0.0
    for dy in range(3):
        for dx in range(3):
            img_l = img_l + g3[dy, dx] * xp3[:, dy:dy + H, dx:dx + W, :]
    smooth_h = 0.0
    for dy in range(5):
        for dx in range(5):
            smooth_h = smooth_h + g5[dy, dx] * xp5[:, dy:dy + H, dx:dx + W, :]
    img_h = x - smooth_h

    scl = jnp.einsum("nhwc,cq->nhwq", img_l, params["wsl"]) * params["ssl"] + params["bsl"]
    sch = jnp.einsum("nhwc,cq->nhwq", img_h, params["wsh"]) * params["ssh"] + params["bsh"]
    out = jnp.maximum(h3 + scl + sch, 0.0)
    return jnp.transpose(out, (0, 3, 1, 2))


# ----------------------------------------------------------------------------
# Deterministic parameter construction
# ----------------------------------------------------------------------------
def bn_fold(key, c, eps=1e-5):
    k1, k2, k3, k4 = jax.random.split(key, 4)
    gamma = 1.0 + 0.1 * jax.random.normal(k1, (c,), jnp.float32)
    beta = 0.1 * jax.random.normal(k2, (c,), jnp.float32)
    mean = 0.1 * jax.random.normal(k3, (c,), jnp.float32)
    var = jax.random.uniform(k4, (c,), jnp.float32, 0.5, 1.5)
    scale = gamma / jnp.sqrt(var + eps)
    bias = beta - mean * scale
    return scale.reshape(1, c), bias.reshape(1, c)


def make_params(in_planes, planes, key):
    expansion = 4
    Cout = expansion * planes
    ks = jax.random.split(key, 12)
    p = {}
    p["w1"] = 0.2 * jax.random.normal(ks[0], (in_planes, planes), jnp.float32)
    p["w2"] = 0.1 * jax.random.normal(ks[1], (3, 3, planes, planes), jnp.float32)
    p["w3"] = 0.1 * jax.random.normal(ks[2], (planes, Cout), jnp.float32)
    p["wsl"] = 0.2 * jax.random.normal(ks[3], (in_planes, Cout), jnp.float32)
    p["wsh"] = 0.2 * jax.random.normal(ks[4], (in_planes, Cout), jnp.float32)
    p["s1"], p["b1"] = bn_fold(ks[5], planes)
    p["s2"], p["b2"] = bn_fold(ks[6], planes)
    p["s3"], p["b3"] = bn_fold(ks[7], Cout)
    p["ssl"], p["bsl"] = bn_fold(ks[8], Cout)
    p["ssh"], p["bsh"] = bn_fold(ks[9], Cout)
    return p


if __name__ == "__main__":
    # small, module-consistent shapes: batch=2, in_planes=4, planes=4, 16x16 spatial
    N, in_planes, H, W = 2, 4, 16, 16
    planes = 4                      # expansion*planes = 16 != in_planes -> shortcuts active

    key = jax.random.PRNGKey(0)
    kx, kp = jax.random.split(key)
    x = jax.random.normal(kx, (N, in_planes, H, W), jnp.float32)
    params = make_params(in_planes, planes, kp)

    out = bottleneck_forward(x, params)
    out = jax.block_until_ready(out)

    ref = jax.block_until_ready(bottleneck_reference(x, params))
    np.testing.assert_allclose(np.asarray(out), np.asarray(ref),
                               rtol=2e-2, atol=2e-2)
    print("KERNEL_OK")
</pallas_src>

<mosaic_0001>
module attributes {stable_mosaic.version = 11 : i64} {
  func.func @kernel(%arg0: i32, %arg1: memref<1x20x80xf32, #tpu.memory_space<vmem>>, %arg2: memref<64x64xf32, #tpu.memory_space<vmem>>, %arg3: memref<1x64xf32, #tpu.memory_space<vmem>>, %arg4: memref<3x64x64xf32, #tpu.memory_space<vmem>>, %arg5: memref<1x64xf32, #tpu.memory_space<vmem>>, %arg6: memref<64x256xf32, #tpu.memory_space<vmem>>, %arg7: memref<64x256xf32, #tpu.memory_space<vmem>>, %arg8: memref<64x256xf32, #tpu.memory_space<vmem>>, %arg9: memref<1x256xf32, #tpu.memory_space<vmem>>, %arg10: memref<1x16x256xf32, #tpu.memory_space<vmem>>) attributes {dimension_semantics = [#tpu.dimension_semantics<parallel>], iteration_bounds = array<i64: 2>, scalar_prefetch = 0 : i64, scratch_operands = 0 : i64, tpu.core_type = #tpu.core_type<tc>, window_params = [{transform_indices = @transform_0, window_bounds = array<i64: 1, 20, 80>}, {pipeline_mode = #tpu.pipeline_mode<synchronous>, transform_indices = @transform_1, window_bounds = array<i64: 64, 64>}, {pipeline_mode = #tpu.pipeline_mode<synchronous>, transform_indices = @transform_2, window_bounds = array<i64: 1, 64>}, {pipeline_mode = #tpu.pipeline_mode<synchronous>, transform_indices = @transform_3, window_bounds = array<i64: 3, 64, 64>}, {pipeline_mode = #tpu.pipeline_mode<synchronous>, transform_indices = @transform_4, window_bounds = array<i64: 1, 64>}, {pipeline_mode = #tpu.pipeline_mode<synchronous>, transform_indices = @transform_5, window_bounds = array<i64: 64, 256>}, {pipeline_mode = #tpu.pipeline_mode<synchronous>, transform_indices = @transform_6, window_bounds = array<i64: 64, 256>}, {pipeline_mode = #tpu.pipeline_mode<synchronous>, transform_indices = @transform_7, window_bounds = array<i64: 64, 256>}, {pipeline_mode = #tpu.pipeline_mode<synchronous>, transform_indices = @transform_8, window_bounds = array<i64: 1, 256>}, {transform_indices = @transform_9, window_bounds = array<i64: 1, 16, 256>}]} {
    %c0 = arith.constant 0 : index
    %c0_0 = arith.constant 0 : index
    %c0_1 = arith.constant 0 : index
    %0 = vector.load %arg1[%c0, %c0_0, %c0_1] : memref<1x20x80xf32, #tpu.memory_space<vmem>>, vector<1x20x80xf32>
    %1 = vector.shape_cast %0 : vector<1x20x80xf32> to vector<20x80xf32>
    %2 = vector.extract_strided_slice %1 {offsets = [2, 8], sizes = [16, 64], strides = [1, 1]} : vector<20x80xf32> to vector<16x64xf32>
    %c0_2 = arith.constant 0 : index
    %c0_3 = arith.constant 0 : index
    %3 = vector.load %arg2[%c0_2, %c0_3] : memref<64x64xf32, #tpu.memory_space<vmem>>, vector<64x64xf32>
    %cst = arith.constant dense<0.000000e+00> : vector<16x64xf32>
    %4 = tpu.matmul %2, %3, %cst {dimension_numbers = #tpu.dot_dimension_numbers<[1], [0], [0], [1], [0, 0, 1, 1], [], []>} : vector<16x64xf32>, vector<64x64xf32>, vector<16x64xf32> -> vector<16x64xf32>
    %c0_4 = arith.constant 0 : index
    %c0_5 = arith.constant 0 : index
    %5 = vector.load %arg3[%c0_4, %c0_5] : memref<1x64xf32, #tpu.memory_space<vmem>>, vector<1x64xf32>
    %6 = vector.broadcast %5 : vector<1x64xf32> to vector<16x64xf32>
    %7 = arith.addf %4, %6 : vector<16x64xf32>
    %cst_6 = arith.constant 0.000000e+00 : f32
    %8 = vector.broadcast %cst_6 : f32 to vector<16x64xf32>
    %9 = arith.maximumf %7, %8 : vector<16x64xf32>
    %cst_7 = arith.constant 0.000000e+00 : f32
    %10 = vector.broadcast %cst_7 : f32 to vector<1x64xf32>
    %11 = tpu.concatenate %10, %9, %10 in 0 : vector<1x64xf32>, vector<16x64xf32>, vector<1x64xf32> -> vector<18x64xf32>
    %cst_8 = arith.constant 0.000000e+00 : f32
    %12 = vector.broadcast %cst_8 : f32 to vector<16x64xf32>
    %13 = vector.extract_strided_slice %11 {offsets = [0, 0], sizes = [16, 64], strides = [1, 1]} : vector<18x64xf32> to vector<16x64xf32>
    %c0_9 = arith.constant 0 : index
    %c0_10 = arith.constant 0 : index
    %c0_11 = arith.constant 0 : index
    %14 = vector.load %arg4[%c0_9, %c0_10, %c0_11] : memref<3x64x64xf32, #tpu.memory_space<vmem>>, vector<1x64x64xf32>
    %15 = vector.shape_cast %14 : vector<1x64x64xf32> to vector<64x64xf32>
    %cst_12 = arith.constant dense<0.000000e+00> : vector<16x64xf32>
    %16 = tpu.matmul %13, %15, %cst_12 {dimension_numbers = #tpu.dot_dimension_numbers<[1], [0], [0], [1], [0, 0, 1, 1], [], []>} : vector<16x64xf32>, vector<64x64xf32>, vector<16x64xf32> -> vector<16x64xf32>
    %17 = arith.addf %12, %16 : vector<16x64xf32>
    %18 = vector.extract_strided_slice %11 {offsets = [1, 0], sizes = [16, 64], strides = [1, 1]} : vector<18x64xf32> to vector<16x64xf32>
    %c1 = arith.constant 1 : index
    %c0_13 = arith.constant 0 : index
    %c0_14 = arith.constant 0 : index
    %19 = vector.load %arg4[%c1, %c0_13, %c0_14] : memref<3x64x64xf32, #tpu.memory_space<vmem>>, vector<1x64x64xf32>
    %20 = vector.shape_cast %19 : vector<1x64x64xf32> to vector<64x64xf32>
    %cst_15 = arith.constant dense<0.000000e+00> : vector<16x64xf32>
    %21 = tpu.matmul %18, %20, %cst_15 {dimension_numbers = #tpu.dot_dimension_numbers<[1], [0], [0], [1], [0, 0, 1, 1], [], []>} : vector<16x64xf32>, vector<64x64xf32>, vector<16x64xf32> -> vector<16x64xf32>
    %22 = arith.addf %17, %21 : vector<16x64xf32>
    %23 = vector.extract_strided_slice %11 {offsets = [2, 0], sizes = [16, 64], strides = [1, 1]} : vector<18x64xf32> to vector<16x64xf32>
    %c2 = arith.constant 2 : index
    %c0_16 = arith.constant 0 : index
    %c0_17 = arith.constant 0 : index
    %24 = vector.load %arg4[%c2, %c0_16, %c0_17] : memref<3x64x64xf32, #tpu.memory_space<vmem>>, vector<1x64x64xf32>
    %25 = vector.shape_cast %24 : vector<1x64x64xf32> to vector<64x64xf32>
    %cst_18 = arith.constant dense<0.000000e+00> : vector<16x64xf32>
    %26 = tpu.matmul %23, %25, %cst_18 {dimension_numbers = #tpu.dot_dimension_numbers<[1], [0], [0], [1], [0, 0, 1, 1], [], []>} : vector<16x64xf32>, vector<64x64xf32>, vector<16x64xf32> -> vector<16x64xf32>
    %27 = arith.addf %22, %26 : vector<16x64xf32>
    %c0_19 = arith.constant 0 : index
    %c0_20 = arith.constant 0 : index
    %28 = vector.load %arg5[%c0_19, %c0_20] : memref<1x64xf32, #tpu.memory_space<vmem>>, vector<1x64xf32>
    %29 = vector.broadcast %28 : vector<1x64xf32> to vector<16x64xf32>
    %30 = arith.addf %27, %29 : vector<16x64xf32>
    %cst_21 = arith.constant 0.000000e+00 : f32
    %31 = vector.broadcast %cst_21 : f32 to vector<16x64xf32>
    %32 = arith.maximumf %30, %31 : vector<16x64xf32>
    %c0_22 = arith.constant 0 : index
    %c0_23 = arith.constant 0 : index
    %33 = vector.load %arg6[%c0_22, %c0_23] : memref<64x256xf32, #tpu.memory_space<vmem>>, vector<64x256xf32>
    %cst_24 = arith.constant dense<0.000000e+00> : vector<16x256xf32>
    %34 = tpu.matmul %32, %33, %cst_24 {dimension_numbers = #tpu.dot_dimension_numbers<[1], [0], [0], [1], [0, 0, 1, 1], [], []>} : vector<16x64xf32>, vector<64x256xf32>, vector<16x256xf32> -> vector<16x256xf32>
    %35 = vector.extract_strided_slice %1 {offsets = [1, 4], sizes = [18, 72], strides = [1, 1]} : vector<20x80xf32> to vector<18x72xf32>
    %36 = vector.extract_strided_slice %35 {offsets = [0, 0], sizes = [18, 64], strides = [1, 1]} : vector<18x72xf32> to vector<18x64xf32>
    %cst_25 = arith.constant 0.274068624 : f32
    %37 = vector.broadcast %cst_25 : f32 to vector<18x64xf32>
    %38 = arith.mulf %37, %36 : vector<18x64xf32>
    %39 = vector.extract_strided_slice %35 {offsets = [0, 4], sizes = [18, 64], strides = [1, 1]} : vector<18x72xf32> to vector<18x64xf32>
    %cst_26 = arith.constant 0.451862752 : f32
    %40 = vector.broadcast %cst_26 : f32 to vector<18x64xf32>
    %41 = arith.mulf %40, %39 : vector<18x64xf32>
    %42 = arith.addf %38, %41 : vector<18x64xf32>
    %43 = vector.extract_strided_slice %35 {offsets = [0, 8], sizes = [18, 64], strides = [1, 1]} : vector<18x72xf32> to vector<18x64xf32>
    %cst_27 = arith.constant 0.274068624 : f32
    %44 = vector.broadcast %cst_27 : f32 to vector<18x64xf32>
    %45 = arith.mulf %44, %43 : vector<18x64xf32>
    %46 = arith.addf %42, %45 : vector<18x64xf32>
    %47 = vector.extract_strided_slice %46 {offsets = [0, 0], sizes = [16, 64], strides = [1, 1]} : vector<18x64xf32> to vector<16x64xf32>
    %cst_28 = arith.constant 0.274068624 : f32
    %48 = vector.broadcast %cst_28 : f32 to vector<16x64xf32>
    %49 = arith.mulf %48, %47 : vector<16x64xf32>
    %50 = vector.extract_strided_slice %46 {offsets = [1, 0], sizes = [16, 64], strides = [1, 1]} : vector<18x64xf32> to vector<16x64xf32>
    %cst_29 = arith.constant 0.451862752 : f32
    %51 = vector.broadcast %cst_29 : f32 to vector<16x64xf32>
    %52 = arith.mulf %51, %50 : vector<16x64xf32>
    %53 = arith.addf %49, %52 : vector<16x64xf32>
    %54 = vector.extract_strided_slice %46 {offsets = [2, 0], sizes = [16, 64], strides = [1, 1]} : vector<18x64xf32> to vector<16x64xf32>
    %cst_30 = arith.constant 0.274068624 : f32
    %55 = vector.broadcast %cst_30 : f32 to vector<16x64xf32>
    %56 = arith.mulf %55, %54 : vector<16x64xf32>
    %57 = arith.addf %53, %56 : vector<16x64xf32>
    %58 = vector.extract_strided_slice %1 {offsets = [0, 0], sizes = [20, 64], strides = [1, 1]} : vector<20x80xf32> to vector<20x64xf32>
    %cst_31 = arith.constant 0.054488685 : f32
    %59 = vector.broadcast %cst_31 : f32 to vector<20x64xf32>
    %60 = arith.mulf %59, %58 : vector<20x64xf32>
    %61 = vector.extract_strided_slice %1 {offsets = [0, 4], sizes = [20, 64], strides = [1, 1]} : vector<20x80xf32> to vector<20x64xf32>
    %cst_32 = arith.constant 0.244201347 : f32
    %62 = vector.broadcast %cst_32 : f32 to vector<20x64xf32>
    %63 = arith.mulf %62, %61 : vector<20x64xf32>
    %64 = arith.addf %60, %63 : vector<20x64xf32>
    %65 = vector.extract_strided_slice %1 {offsets = [0, 8], sizes = [20, 64], strides = [1, 1]} : vector<20x80xf32> to vector<20x64xf32>
    %cst_33 = arith.constant 0.402619958 : f32
    %66 = vector.broadcast %cst_33 : f32 to vector<20x64xf32>
    %67 = arith.mulf %66, %65 : vector<20x64xf32>
    %68 = arith.addf %64, %67 : vector<20x64xf32>
    %69 = vector.extract_strided_slice %1 {offsets = [0, 12], sizes = [20, 64], strides = [1, 1]} : vector<20x80xf32> to vector<20x64xf32>
    %cst_34 = arith.constant 0.244201347 : f32
    %70 = vector.broadcast %cst_34 : f32 to vector<20x64xf32>
    %71 = arith.mulf %70, %69 : vector<20x64xf32>
    %72 = arith.addf %68, %71 : vector<20x64xf32>
    %73 = vector.extract_strided_slice %1 {offsets = [0, 16], sizes = [20, 64], strides = [1, 1]} : vector<20x80xf32> to vector<20x64xf32>
    %cst_35 = arith.constant 0.054488685 : f32
    %74 = vector.broadcast %cst_35 : f32 to vector<20x64xf32>
    %75 = arith.mulf %74, %73 : vector<20x64xf32>
    %76 = arith.addf %72, %75 : vector<20x64xf32>
    %77 = vector.extract_strided_slice %76 {offsets = [0, 0], sizes = [16, 64], strides = [1, 1]} : vector<20x64xf32> to vector<16x64xf32>
    %cst_36 = arith.constant 0.054488685 : f32
    %78 = vector.broadcast %cst_36 : f32 to vector<16x64xf32>
    %79 = arith.mulf %78, %77 : vector<16x64xf32>
    %80 = vector.extract_strided_slice %76 {offsets = [1, 0], sizes = [16, 64], strides = [1, 1]} : vector<20x64xf32> to vector<16x64xf32>
    %cst_37 = arith.constant 0.244201347 : f32
    %81 = vector.broadcast %cst_37 : f32 to vector<16x64xf32>
    %82 = arith.mulf %81, %80 : vector<16x64xf32>
    %83 = arith.addf %79, %82 : vector<16x64xf32>
    %84 = vector.extract_strided_slice %76 {offsets = [2, 0], sizes = [16, 64], strides = [1, 1]} : vector<20x64xf32> to vector<16x64xf32>
    %cst_38 = arith.constant 0.402619958 : f32
    %85 = vector.broadcast %cst_38 : f32 to vector<16x64xf32>
    %86 = arith.mulf %85, %84 : vector<16x64xf32>
    %87 = arith.addf %83, %86 : vector<16x64xf32>
    %88 = vector.extract_strided_slice %76 {offsets = [3, 0], sizes = [16, 64], strides = [1, 1]} : vector<20x64xf32> to vector<16x64xf32>
    %cst_39 = arith.constant 0.244201347 : f32
    %89 = vector.broadcast %cst_39 : f32 to vector<16x64xf32>
    %90 = arith.mulf %89, %88 : vector<16x64xf32>
    %91 = arith.addf %87, %90 : vector<16x64xf32>
    %92 = vector.extract_strided_slice %76 {offsets = [4, 0], sizes = [16, 64], strides = [1, 1]} : vector<20x64xf32> to vector<16x64xf32>
    %cst_40 = arith.constant 0.054488685 : f32
    %93 = vector.broadcast %cst_40 : f32 to vector<16x64xf32>
    %94 = arith.mulf %93, %92 : vector<16x64xf32>
    %95 = arith.addf %91, %94 : vector<16x64xf32>
    %96 = arith.subf %2, %95 : vector<16x64xf32>
    %c0_41 = arith.constant 0 : index
    %c0_42 = arith.constant 0 : index
    %97 = vector.load %arg7[%c0_41, %c0_42] : memref<64x256xf32, #tpu.memory_space<vmem>>, vector<64x256xf32>
    %cst_43 = arith.constant dense<0.000000e+00> : vector<16x256xf32>
    %98 = tpu.matmul %57, %97, %cst_43 {dimension_numbers = #tpu.dot_dimension_numbers<[1], [0], [0], [1], [0, 0, 1, 1], [], []>} : vector<16x64xf32>, vector<64x256xf32>, vector<16x256xf32> -> vector<16x256xf32>
    %c0_44 = arith.constant 0 : index
    %c0_45 = arith.constant 0 : index
    %99 = vector.load %arg8[%c0_44, %c0_45] : memref<64x256xf32, #tpu.memory_space<vmem>>, vector<64x256xf32>
    %cst_46 = arith.constant dense<0.000000e+00> : vector<16x256xf32>
    %100 = tpu.matmul %96, %99, %cst_46 {dimension_numbers = #tpu.dot_dimension_numbers<[1], [0], [0], [1], [0, 0, 1, 1], [], []>} : vector<16x64xf32>, vector<64x256xf32>, vector<16x256xf32> -> vector<16x256xf32>
    %101 = arith.addf %98, %100 : vector<16x256xf32>
    %102 = arith.addf %34, %101 : vector<16x256xf32>
    %c0_47 = arith.constant 0 : index
    %c0_48 = arith.constant 0 : index
    %103 = vector.load %arg9[%c0_47, %c0_48] : memref<1x256xf32, #tpu.memory_space<vmem>>, vector<1x256xf32>
    %104 = vector.broadcast %103 : vector<1x256xf32> to vector<16x256xf32>
    %105 = arith.addf %102, %104 : vector<16x256xf32>
    %cst_49 = arith.constant 0.000000e+00 : f32
    %106 = vector.broadcast %cst_49 : f32 to vector<16x256xf32>
    %107 = arith.maximumf %105, %106 : vector<16x256xf32>
    %c0_50 = arith.constant 0 : index
    %c0_51 = arith.constant 0 : index
    %c0_52 = arith.constant 0 : index
    %108 = vector.load %arg10[%c0_50, %c0_51, %c0_52] : memref<1x16x256xf32, #tpu.memory_space<vmem>>, vector<1x16x256xf32>
    %109 = vector.shape_cast %108 : vector<1x16x256xf32> to vector<16x256xf32>
    %110 = vector.shape_cast %107 : vector<16x256xf32> to vector<1x16x256xf32>
    tpu.vector_store %arg10[%c0_50, %c0_51, %c0_52], %110 {strides = array<i32>} : memref<1x16x256xf32, #tpu.memory_space<vmem>>, vector<1x16x256xf32>,
    return
  }
  func.func @transform_0(%arg0: i32) -> (i32, i32, i32) {
    %c0_i32 = arith.constant 0 : i32
    %c0_i32_0 = arith.constant 0 : i32
    %c0_i32_1 = arith.constant 0 : i32
    return %arg0, %c0_i32, %c0_i32_0 : i32, i32, i32
  }
  func.func @transform_1(%arg0: i32) -> (i32, i32) {
    %c0_i32 = arith.constant 0 : i32
    %c0_i32_0 = arith.constant 0 : i32
    %c0_i32_1 = arith.constant 0 : i32
    return %c0_i32, %c0_i32_0 : i32, i32
  }
  func.func @transform_2(%arg0: i32) -> (i32, i32) {
    %c0_i32 = arith.constant 0 : i32
    %c0_i32_0 = arith.constant 0 : i32
    %c0_i32_1 = arith.constant 0 : i32
    return %c0_i32, %c0_i32_0 : i32, i32
  }
  func.func @transform_3(%arg0: i32) -> (i32, i32, i32) {
    %c0_i32 = arith.constant 0 : i32
    %c0_i32_0 = arith.constant 0 : i32
    %c0_i32_1 = arith.constant 0 : i32
    %c0_i32_2 = arith.constant 0 : i32
    return %c0_i32, %c0_i32_0, %c0_i32_1 : i32, i32, i32
  }
  func.func @transform_4(%arg0: i32) -> (i32, i32) {
    %c0_i32 = arith.constant 0 : i32
    %c0_i32_0 = arith.constant 0 : i32
    %c0_i32_1 = arith.constant 0 : i32
    return %c0_i32, %c0_i32_0 : i32, i32
  }
  func.func @transform_5(%arg0: i32) -> (i32, i32) {
    %c0_i32 = arith.constant 0 : i32
    %c0_i32_0 = arith.constant 0 : i32
    %c0_i32_1 = arith.constant 0 : i32
    return %c0_i32, %c0_i32_0 : i32, i32
  }
  func.func @transform_6(%arg0: i32) -> (i32, i32) {
    %c0_i32 = arith.constant 0 : i32
    %c0_i32_0 = arith.constant 0 : i32
    %c0_i32_1 = arith.constant 0 : i32
    return %c0_i32, %c0_i32_0 : i32, i32
  }
  func.func @transform_7(%arg0: i32) -> (i32, i32) {
    %c0_i32 = arith.constant 0 : i32
    %c0_i32_0 = arith.constant 0 : i32
    %c0_i32_1 = arith.constant 0 : i32
    return %c0_i32, %c0_i32_0 : i32, i32
  }
  func.func @transform_8(%arg0: i32) -> (i32, i32) {
    %c0_i32 = arith.constant 0 : i32
    %c0_i32_0 = arith.constant 0 : i32
    %c0_i32_1 = arith.constant 0 : i32
    return %c0_i32, %c0_i32_0 : i32, i32
  }
  func.func @transform_9(%arg0: i32) -> (i32, i32, i32) {
    %c0_i32 = arith.constant 0 : i32
    %c0_i32_0 = arith.constant 0 : i32
    %c0_i32_1 = arith.constant 0 : i32
    return %arg0, %c0_i32, %c0_i32_0 : i32, i32, i32
  }
}

</mosaic_0001>

<llo_original>
// kernel: tpu_custom_call.1
$region0: #{tpu_custom_call.1}
  #allocation0 [shape = 'u32[]', space=smem, size = 0x4, offset = 0x4, fixed_abs, tag = 'smem constant byte address 0x4 - core index']
  #allocation1 [shape = 'u32[72,128]{1,0:T(1,128)}', space=vmem, size = 0x9000, scoped, tag = 'internal scratch']
  %s0 = inlined_call_operand.vmem [shape: f32[2,20,80], index: 0, kind: input, shape index: {}]
  %s1 = inlined_call_operand.vmem [shape: f32[64,64], index: 1, kind: input, shape index: {}]
  %s2 = inlined_call_operand.vmem [shape: f32[1,64], index: 2, kind: input, shape index: {}]
  %s3 = inlined_call_operand.hbm [shape: f32[3,64,64], index: 3, kind: input, shape index: {}]
  %s4 = inlined_call_operand.vmem [shape: f32[1,64], index: 4, kind: input, shape index: {}]
  %s5 = inlined_call_operand.hbm [shape: f32[64,256], index: 5, kind: input, shape index: {}]
  %s6 = inlined_call_operand.hbm [shape: f32[64,256], index: 6, kind: input, shape index: {}]
  %s7 = inlined_call_operand.hbm [shape: f32[64,256], index: 7, kind: input, shape index: {}]
  %s8 = inlined_call_operand.vmem [shape: f32[1,256], index: 8, kind: input, shape index: {}]
  %s9 = inlined_call_operand.hbm [shape: f32[2,16,256], index: 9, kind: output, shape index: {}]
  %s10 = sld [smem:[#allocation0]]
  $region85: #{tpu_custom_call.1} parent=0
    _
  %s12 = ssub.s32 1, %s10
  %s13 = scalar_select 0, %s12, %s10
  $region1: #{tpu_custom_call.1} parent=0
    #allocation2 [shape = 'u8[98304]{0}', space=vmem, size = 0x18000, scoped, tag = 'input window, operand 3, single buffered']
    #allocation3 [shape = 's32[2]{0}', space=sflag, size = 0x8, scoped, tag = 'scoped memory for tpu_custom_call.1']
    #allocation4 [shape = 's32[2]{0}', space=sflag, size = 0x8, scoped, tag = 'scoped memory for tpu_custom_call.1']
    #allocation5 [shape = 'u8[65536]{0}', space=vmem, size = 0x10000, scoped, tag = 'input window, operand 5, single buffered']
    #allocation6 [shape = 's32[1]{0}', space=sflag, size = 0x4, scoped, tag = 'scoped memory for tpu_custom_call.1']
    #allocation7 [shape = 'u8[65536]{0}', space=vmem, size = 0x10000, scoped, tag = 'input window, operand 6, single buffered']
    #allocation8 [shape = 'u8[65536]{0}', space=vmem, size = 0x10000, scoped, tag = 'input window, operand 7, single buffered']
    #allocation9 [shape = 's32[1]{0}', space=sflag, size = 0x4, scoped, tag = 'scoped memory for tpu_custom_call.1']
    #allocation10 [shape = 'u8[32768]{0}', space=vmem, size = 0x8000, scoped, tag = 'output window, operand 0']
    %14 = vsyncpa [#allocation3], 0
    %15 = vsyncpa [#allocation6], 0
    %16 = vsyncpa [#allocation9], 0
    %17 = vsyncpa [#allocation4], 0
    %s18 = scalar_lea.sflag [#allocation4], 1
    %19 = vsyncpa %s18, 0
    loop: start=0, step=1, limit=4
    $region2: #{tpu_custom_call.1} parent=1 // loop_pre_header
      _
    $region3: #{tpu_custom_call.1} parent=1 // loop_header
      %s21 = sphi 0, %s25
      %p22 = scmp.ge.s32.totalorder %s21, 4
      %s31 = sphi 0, %s33
      %s34 = sphi 0, %s31
      %s35 = sphi 0, %s34
      %s51 = sphi 0, %s35
      %s55 = sphi 0, %s55
      %s57 = sphi 0, %s55
      %s58 = sphi 0, %s57
      %s72 = sphi 0, %s58
      %s76 = sphi 0, %s76
      %s78 = sphi 0, %s76
      %s79 = sphi 0, %s78
      %s93 = sphi 0, %s79
      %s97 = sphi 0, %s97
      %s99 = sphi 0, %s97
      %s100 = sphi 0, %s99
      %s114 = sphi 0, %s100
      %s118 = sphi 0, %s118
      %s120 = sphi 0, %s118
      %s121 = sphi 0, %s120
      %s135 = sphi 0, %s121
      %s139 = sphi 0, %s139
      %s141 = sphi 0, %s139
      %s142 = sphi 0, %s141
      %s156 = sphi 0, %s142
      %s160 = sphi 0, %s160
      %s162 = sphi 0, %s160
      %s163 = sphi 0, %s162
      %s177 = sphi 0, %s163
      %s181 = sphi 0, %s181
      %s183 = sphi 0, %s181
      %s184 = sphi 0, %s183
      %s198 = sphi 0, %s184
      %s202 = sphi 0, %s202
      %s204 = sphi 0, %s202
      %s205 = sphi 0, %s204
      %s219 = sphi 0, %s205
      %s225 = sphi 0, %s227
      %s228 = sphi 0, %s225
      %s229 = sphi 0, %s228
      %s245 = sphi 0, %s229
    $region4: #{tpu_custom_call.1} parent=1 // loop_header_branch
      %24 = sbr.rel (%p22) target = $region8
    $region5: #{tpu_custom_call.1} parent=1 // loop_body
      %s26 = ssub.s32 %s21, 1
      %s27 = ssub.s32 %s21, 2
      %s28 = sadd.s32 %s21, 1
      %s29 = ssub.s32 %s21, %s28
      %p30 = scmp.eq.s32.totalorder %s29, 0
      %s32 = sadd.s32 %s31, 1
      %s33 = scalar_select %p30, %s31, %s32
      %p36 = pneg %p30
      %p37 = scmp.eq.s32.totalorder %s21, 1
      %p38 = por %p36, %p37
      %p39 = scmp.ne.s32.totalorder %s31, %s34
      %p40 = scmp.eq.s32.totalorder %s21, 0
      %p41 = por %p39, %p40
      %p42 = scmp.ne.s32.totalorder %s31, %s34
      %p43 = scmp.eq.s32.totalorder %s26, 1
      %p44 = por %p42, %p43
      %p45 = scmp.ne.s32.totalorder %s34, %s35
      %p46 = scmp.eq.s32.totalorder %s26, 0
      %p47 = por %p45, %p46
      %p48 = scmp.ne.s32.totalorder %s34, %s35
      %p49 = scmp.eq.s32.totalorder %s27, 1
      %p50 = por %p48, %p49
      %p52 = scmp.ne.s32.totalorder %s35, %s51
      %p53 = scmp.eq.s32.totalorder %s27, 0
      %p54 = por %p52, %p53
      %s56 = sadd.s32 %s55, 1
      %p59 = scmp.eq.s32.totalorder %s21, 1
      %p60 = scmp.ne.s32.totalorder %s55, %s57
      %p61 = scmp.eq.s32.totalorder %s21, 0
      %p62 = por %p60, %p61
      %p63 = scmp.ne.s32.totalorder %s55, %s57
      %p64 = scmp.eq.s32.totalorder %s26, 1
      %p65 = por %p63, %p64
      %p66 = scmp.ne.s32.totalorder %s57, %s58
      %p67 = scmp.eq.s32.totalorder %s26, 0
      %p68 = por %p66, %p67
      %p69 = scmp.ne.s32.totalorder %s57, %s58
      %p70 = scmp.eq.s32.totalorder %s27, 1
      %p71 = por %p69, %p70
      %p73 = scmp.ne.s32.totalorder %s58, %s72
      %p74 = scmp.eq.s32.totalorder %s27, 0
      %p75 = por %p73, %p74
      %s77 = sadd.s32 %s76, 1
      %p80 = scmp.eq.s32.totalorder %s21, 1
      %p81 = scmp.ne.s32.totalorder %s76, %s78
      %p82 = scmp.eq.s32.totalorder %s21, 0
      %p83 = por %p81, %p82
      %p84 = scmp.ne.s32.totalorder %s76, %s78
      %p85 = scmp.eq.s32.totalorder %s26, 1
      %p86 = por %p84, %p85
      %p87 = scmp.ne.s32.totalorder %s78, %s79
      %p88 = scmp.eq.s32.totalorder %s26, 0
      %p89 = por %p87, %p88
      %p90 = scmp.ne.s32.totalorder %s78, %s79
      %p91 = scmp.eq.s32.totalorder %s27, 1
      %p92 = por %p90, %p91
      %p94 = scmp.ne.s32.totalorder %s79, %s93
      %p95 = scmp.eq.s32.totalorder %s27, 0
      %p96 = por %p94, %p95
      %s98 = sadd.s32 %s97, 1
      %p101 = scmp.eq.s32.totalorder %s21, 1
      %p102 = scmp.ne.s32.totalorder %s97, %s99
      %p103 = scmp.eq.s32.totalorder %s21, 0
      %p104 = por %p102, %p103
      %p105 = scmp.ne.s32.totalorder %s97, %s99
      %p106 = scmp.eq.s32.totalorder %s26, 1
      %p107 = por %p105, %p106
      %p108 = scmp.ne.s32.totalorder %s99, %s100
      %p109 = scmp.eq.s32.totalorder %s26, 0
      %p110 = por %p108, %p109
      %p111 = scmp.ne.s32.totalorder %s99, %s100
      %p112 = scmp.eq.s32.totalorder %s27, 1
      %p113 = por %p111, %p112
      %p115 = scmp.ne.s32.totalorder %s100, %s114
      %p116 = scmp.eq.s32.totalorder %s27, 0
      %p117 = por %p115, %p116
      %s119 = sadd.s32 %s118, 1
      %p122 = scmp.eq.s32.totalorder %s21, 1
      %p123 = scmp.ne.s32.totalorder %s118, %s120
      %p124 = scmp.eq.s32.totalorder %s21, 0
      %p125 = por %p123, %p124
      %p126 = scmp.ne.s32.totalorder %s118, %s120
      %p127 = scmp.eq.s32.totalorder %s26, 1
      %p128 = por %p126, %p127
      %p129 = scmp.ne.s32.totalorder %s120, %s121
      %p130 = scmp.eq.s32.totalorder %s26, 0
      %p131 = por %p129, %p130
      %p132 = scmp.ne.s32.totalorder %s120, %s121
      %p133 = scmp.eq.s32.totalorder %s27, 1
      %p134 = por %p132, %p133
      %p136 = scmp.ne.s32.totalorder %s121, %s135
      %p137 = scmp.eq.s32.totalorder %s27, 0
      %p138 = por %p136, %p137
      %s140 = sadd.s32 %s139, 1
      %p143 = scmp.eq.s32.totalorder %s21, 1
      %p144 = scmp.ne.s32.totalorder %s139, %s141
      %p145 = scmp.eq.s32.totalorder %s21, 0
      %p146 = por %p144, %p145
      %p147 = scmp.ne.s32.totalorder %s139, %s141
      %p148 = scmp.eq.s32.totalorder %s26, 1
      %p149 = por %p147, %p148
      %p150 = scmp.ne.s32.totalorder %s141, %s142
      %p151 = scmp.eq.s32.totalorder %s26, 0
      %p152 = por %p150, %p151
      %p153 = scmp.ne.s32.totalorder %s141, %s142
      %p154 = scmp.eq.s32.totalorder %s27, 1
      %p155 = por %p153, %p154
      %p157 = scmp.ne.s32.totalorder %s142, %s156
      %p158 = scmp.eq.s32.totalorder %s27, 0
      %p159 = por %p157, %p158
      %s161 = sadd.s32 %s160, 1
      %p164 = scmp.eq.s32.totalorder %s21, 1
      %p165 = scmp.ne.s32.totalorder %s160, %s162
      %p166 = scmp.eq.s32.totalorder %s21, 0
      %p167 = por %p165, %p166
      %p168 = scmp.ne.s32.totalorder %s160, %s162
      %p169 = scmp.eq.s32.totalorder %s26, 1
      %p170 = por %p168, %p169
      %p171 = scmp.ne.s32.totalorder %s162, %s163
      %p172 = scmp.eq.s32.totalorder %s26, 0
      %p173 = por %p171, %p172
      %p174 = scmp.ne.s32.totalorder %s162, %s163
      %p175 = scmp.eq.s32.totalorder %s27, 1
      %p176 = por %p174, %p175
      %p178 = scmp.ne.s32.totalorder %s163, %s177
      %p179 = scmp.eq.s32.totalorder %s27, 0
      %p180 = por %p178, %p179
      %s182 = sadd.s32 %s181, 1
      %p185 = scmp.eq.s32.totalorder %s21, 1
      %p186 = scmp.ne.s32.totalorder %s181, %s183
      %p187 = scmp.eq.s32.totalorder %s21, 0
      %p188 = por %p186, %p187
      %p189 = scmp.ne.s32.totalorder %s181, %s183
      %p190 = scmp.eq.s32.totalorder %s26, 1
      %p191 = por %p189, %p190
      %p192 = scmp.ne.s32.totalorder %s183, %s184
      %p193 = scmp.eq.s32.totalorder %s26, 0
      %p194 = por %p192, %p193
      %p195 = scmp.ne.s32.totalorder %s183, %s184
      %p196 = scmp.eq.s32.totalorder %s27, 1
      %p197 = por %p195, %p196
      %p199 = scmp.ne.s32.totalorder %s184, %s198
      %p200 = scmp.eq.s32.totalorder %s27, 0
      %p201 = por %p199, %p200
      %s203 = sadd.s32 %s202, 1
      %p206 = scmp.eq.s32.totalorder %s21, 1
      %p207 = scmp.ne.s32.totalorder %s202, %s204
      %p208 = scmp.eq.s32.totalorder %s21, 0
      %p209 = por %p207, %p208
      %p210 = scmp.ne.s32.totalorder %s202, %s204
      %p211 = scmp.eq.s32.totalorder %s26, 1
      %p212 = por %p210, %p211
      %p213 = scmp.ne.s32.totalorder %s204, %s205
      %p214 = scmp.eq.s32.totalorder %s26, 0
      %p215 = por %p213, %p214
      %p216 = scmp.ne.s32.totalorder %s204, %s205
      %p217 = scmp.eq.s32.totalorder %s27, 1
      %p218 = por %p216, %p217
      %p220 = scmp.ne.s32.totalorder %s205, %s219
      %p221 = scmp.eq.s32.totalorder %s27, 0
      %p222 = por %p220, %p221
      %s223 = ssub.s32 %s21, %s28
      %p224 = scmp.eq.s32.totalorder %s223, 0
      %s226 = sadd.s32 %s225, 1
      %s227 = scalar_select %p224, %s225, %s226
      %p230 = pneg %p224
      %p231 = scmp.eq.s32.totalorder %s21, 1
      %p232 = por %p230, %p231
      %p233 = scmp.ne.s32.totalorder %s225, %s228
      %p234 = scmp.eq.s32.totalorder %s21, 0
      %p235 = por %p233, %p234
      %p236 = scmp.ne.s32.totalorder %s225, %s228
      %p237 = scmp.eq.s32.totalorder %s26, 1
      %p238 = por %p236, %p237
      %p239 = scmp.ne.s32.totalorder %s228, %s229
      %p240 = scmp.eq.s32.totalorder %s26, 0
      %p241 = por %p239, %p240
      %p242 = scmp.ne.s32.totalorder %s228, %s229
      %p243 = scmp.eq.s32.totalorder %s27, 1
      %p244 = por %p242, %p243
      %p246 = scmp.ne.s32.totalorder %s229, %s245
      %p247 = scmp.eq.s32.totalorder %s27, 0
      %p248 = por %p246, %p247
      %p249 = scmp.le.s32.totalorder 1, %s21
      %p250 = scmp.lt.s32.totalorder %s21, 3
      %p251 = pnand %p249, %p250
      %p252 = pneg %p251
      // Predicated region
      $region9: #{tpu_custom_call.1} parent=5 // pred_check
        _
      $region10: #{tpu_custom_call.1} parent=5 // pred_check_branch
        %254 = sbr.rel (%p251) target = $region12
      $region11: #{tpu_custom_call.1} parent=5 // pred_region
        %s255 = ssub.s32 %s21, 1
        // Predicated region
        $region13: #{tpu_custom_call.1} parent=11 // pred_check
          %p256 = pneg %p68
        $region14: #{tpu_custom_call.1} parent=11 // pred_check_branch
          %258 = sbr.rel (%p256) target = $region16
        $region15: #{tpu_custom_call.1} parent=11 // pred_region
          _
        $region16: #{tpu_custom_call.1} parent=11 // pred_fallthru
          _
        // Predicated region
        $region17: #{tpu_custom_call.1} parent=11 // pred_check
          %p259 = pneg %p89
        $region18: #{tpu_custom_call.1} parent=11 // pred_check_branch
          %261 = sbr.rel (%p259) target = $region20
        $region19: #{tpu_custom_call.1} parent=11 // pred_region
          _
        $region20: #{tpu_custom_call.1} parent=11 // pred_fallthru
          _
        // Predicated region
        $region21: #{tpu_custom_call.1} parent=11 // pred_check
          %p262 = pneg %p110
        $region22: #{tpu_custom_call.1} parent=11 // pred_check_branch
          %264 = sbr.rel (%p262) target = $region24
        $region23: #{tpu_custom_call.1} parent=11 // pred_region
          %266 = vsyncadd [#allocation3], 0
          %s267 = sshll.u32 %s3, 4
          %s268 = int_to_ptr.hbm [resolvable:$true] %s267
          %s269 = sshll.u32 [#allocation2], 4
          %s270 = int_to_ptr.vmem [resolvable:$true] %s269
          %275 = dma.hbm_to_vmem [thread:$0]  %s268, 3072, %s270, [#allocation3], 128, 128, 8
        $region24: #{tpu_custom_call.1} parent=11 // pred_fallthru
          _
        // Predicated region
        $region25: #{tpu_custom_call.1} parent=11 // pred_check
          %p276 = pneg %p131
        $region26: #{tpu_custom_call.1} parent=11 // pred_check_branch
          %278 = sbr.rel (%p276) target = $region28
        $region27: #{tpu_custom_call.1} parent=11 // pred_region
          _
        $region28: #{tpu_custom_call.1} parent=11 // pred_fallthru
          _
        // Predicated region
        $region29: #{tpu_custom_call.1} parent=11 // pred_check
          %p279 = pneg %p152
        $region30: #{tpu_custom_call.1} parent=11 // pred_check_branch
          %281 = sbr.rel (%p279) target = $region32
        $region31: #{tpu_custom_call.1} parent=11 // pred_region
          %283 = vsyncadd [#allocation6], 0
          %s284 = sshll.u32 %s5, 4
          %s285 = int_to_ptr.hbm [resolvable:$true] %s284
          %s286 = sshll.u32 [#allocation5], 4
          %s287 = int_to_ptr.vmem [resolvable:$true] %s286
          %292 = dma.hbm_to_vmem [thread:$0]  %s285, 2048, %s287, [#allocation6], 256, 256, 16
        $region32: #{tpu_custom_call.1} parent=11 // pred_fallthru
          _
        // Predicated region
        $region33: #{tpu_custom_call.1} parent=11 // pred_check
          %p293 = pneg %p173
        $region34: #{tpu_custom_call.1} parent=11 // pred_check_branch
          %295 = sbr.rel (%p293) target = $region36
        $region35: #{tpu_custom_call.1} parent=11 // pred_region
          %297 = vsyncadd [#allocation6], 0
          %s298 = sshll.u32 %s6, 4
          %s299 = int_to_ptr.hbm [resolvable:$true] %s298
          %s300 = sshll.u32 [#allocation7], 4
          %s301 = int_to_ptr.vmem [resolvable:$true] %s300
          %306 = dma.hbm_to_vmem [thread:$0]  %s299, 2048, %s301, [#allocation6], 256, 256, 16
        $region36: #{tpu_custom_call.1} parent=11 // pred_fallthru
          _
        // Predicated region
        $region37: #{tpu_custom_call.1} parent=11 // pred_check
          %p307 = pneg %p194
        $region38: #{tpu_custom_call.1} parent=11 // pred_check_branch
          %309 = sbr.rel (%p307) target = $region40
        $region39: #{tpu_custom_call.1} parent=11 // pred_region
          %311 = vsyncadd [#allocation9], 0
          %s312 = sshll.u32 %s7, 4
          %s313 = int_to_ptr.hbm [resolvable:$true] %s312
          %s314 = sshll.u32 [#allocation8], 4
          %s315 = int_to_ptr.vmem [resolvable:$true] %s314
          %320 = dma.hbm_to_vmem [thread:$0]  %s313, 2048, %s315, [#allocation9], 256, 256, 16
        $region40: #{tpu_custom_call.1} parent=11 // pred_fallthru
          _
        // Predicated region
        $region41: #{tpu_custom_call.1} parent=11 // pred_check
          %p321 = pneg %p215
        $region42: #{tpu_custom_call.1} parent=11 // pred_check_branch
          %323 = sbr.rel (%p321) target = $region44
        $region43: #{tpu_custom_call.1} parent=11 // pred_region
          _
        $region44: #{tpu_custom_call.1} parent=11 // pred_fallthru
          _
      $region12: #{tpu_custom_call.1} parent=5 // pred_fallthru
        _
      %p324 = scmp.lt.s32.totalorder %s21, 2
      // Predicated region
      $region45: #{tpu_custom_call.1} parent=5 // pred_check
        %p325 = pneg %p324
      $region46: #{tpu_custom_call.1} parent=5 // pred_check_branch
        %327 = sbr.rel (%p325) target = $region48
      $region47: #{tpu_custom_call.1} parent=5 // pred_region
        // Predicated region
        $region49: #{tpu_custom_call.1} parent=47 // pred_check
          %p328 = pneg %p41
        $region50: #{tpu_custom_call.1} parent=47 // pred_check_branch
          %330 = sbr.rel (%p328) target = $region52
        $region51: #{tpu_custom_call.1} parent=47 // pred_region
          %p331 = scmp.lt.s32.totalorder %s21, 1
          %s332 = scalar_select %p331, %s21, 1
          %s333 = smul.addr %s332, 3
          %s334 = smul.addr %s333, 8
          %s335 = scalar_lea.vmem %s0, %s334
        $region52: #{tpu_custom_call.1} parent=47 // pred_fallthru
          _
      $region48: #{tpu_custom_call.1} parent=5 // pred_fallthru
        _
      %p336 = scmp.le.s32.totalorder 1, %s21
      %p337 = scmp.lt.s32.totalorder %s21, 3
      %p338 = pnand %p336, %p337
      %p339 = pneg %p338
      // Predicated region
      $region53: #{tpu_custom_call.1} parent=5 // pred_check
        _
      $region54: #{tpu_custom_call.1} parent=5 // pred_check_branch
        %341 = sbr.rel (%p338) target = $region56
      $region55: #{tpu_custom_call.1} parent=5 // pred_region
        %s342 = ssub.s32 %s21, 1
        // Predicated region
        $region57: #{tpu_custom_call.1} parent=55 // pred_check
          %p343 = pneg %p110
        $region58: #{tpu_custom_call.1} parent=55 // pred_check_branch
          %345 = sbr.rel (%p343) target = $region60
        $region59: #{tpu_custom_call.1} parent=55 // pred_region
          %347 = dma.done [#allocation3], 3072
        $region60: #{tpu_custom_call.1} parent=55 // pred_fallthru
          _
        // Predicated region
        $region61: #{tpu_custom_call.1} parent=55 // pred_check
          %p348 = pneg %p152
        $region62: #{tpu_custom_call.1} parent=55 // pred_check_branch
          %350 = sbr.rel (%p348) target = $region64
        $region63: #{tpu_custom_call.1} parent=55 // pred_region
          %352 = dma.done [#allocation6], 2048
        $region64: #{tpu_custom_call.1} parent=55 // pred_fallthru
          _
        // Predicated region
        $region65: #{tpu_custom_call.1} parent=55 // pred_check
          %p353 = pneg %p173
        $region66: #{tpu_custom_call.1} parent=55 // pred_check_branch
          %355 = sbr.rel (%p353) target = $region68
        $region67: #{tpu_custom_call.1} parent=55 // pred_region
          %357 = dma.done [#allocation6], 2048
        $region68: #{tpu_custom_call.1} parent=55 // pred_fallthru
          _
        // Predicated region
        $region69: #{tpu_custom_call.1} parent=55 // pred_check
          %p358 = pneg %p194
        $region70: #{tpu_custom_call.1} parent=55 // pred_check_branch
          %360 = sbr.rel (%p358) target = $region72
        $region71: #{tpu_custom_call.1} parent=55 // pred_region
          %362 = dma.done [#allocation9], 2048
        $region72: #{tpu_custom_call.1} parent=55 // pred_fallthru
          _
        %p363 = scmp.lt.s32.totalorder %s26, 1
        %s364 = scalar_select %p363, %s26, 1
        %s365 = smul.addr %s364, 3
        %s366 = smul.addr %s365, 8
        %s367 = scalar_lea.vmem %s0, %s366
        %p368 = pneg %p47
        %p369 = pneg %p44
        %p370 = pneg %p68
        %p371 = pneg %p65
        %p372 = pneg %p89
        %p373 = pneg %p86
        %p374 = pneg %p110
        %p375 = pneg %p107
        %p376 = pneg %p131
        %p377 = pneg %p128
        %p378 = pneg %p152
        %p379 = pneg %p149
        %p380 = pneg %p173
        %p381 = pneg %p170
        %p382 = pneg %p194
        %p383 = pneg %p191
        %p384 = pneg %p215
        %p385 = pneg %p212
        %p386 = pneg %p241
        %p387 = pneg %p238
        %s388 = sand.u32 %s228, 1
        %s389 = scalar_lea.sflag [#allocation4], %s388
        %s390 = sand.u32 %s228, 1
        %s391 = smul.addr %s390, 32
        %s392 = scalar_lea.vmem [#allocation10], %s391
        %p393 = scmp.lt.s32.totalorder %s26, 1
        %s394 = scalar_select %p393, %s26, 1
        %s395 = smul.addr %s394, 3
        %s396 = smul.addr %s395, 8
        %s397 = scalar_lea.vmem %s0, %s396
        %v398 = vld [vmem:[%s397] sm:$0xff]
        %v399 = vld [vmem:[%s397 + $0x8] sm:$0xff]
        %v400 = vld [vmem:[%s397 + $0x10] sm:$0xf]
        %v401 = vld [vmem:[%s1] sm:$0xff]
        %v402 = vld [vmem:[%s1 + $0x8] sm:$0xff]
        %v403 = vld [vmem:[%s1 + $0x10] sm:$0xff]
        %v404 = vld [vmem:[%s1 + $0x18] sm:$0xff]
        %v405 = vld [vmem:[%s1 + $0x20] sm:$0xff]
        %v406 = vld [vmem:[%s1 + $0x28] sm:$0xff]
        %v407 = vld [vmem:[%s1 + $0x30] sm:$0xff]
        %v408 = vld [vmem:[%s1 + $0x38] sm:$0xff]
        %v409 = vld [vmem:[%s2] sm:$0x1]
        %v411 = vperm.slane %v409, 0
        %vm416 = vcmask 1045504
        %v417 = vrot.slane %v398, 2
        %v418 = vrot.slane %v399, 2
        %v419 = vsel %vm416, %v417, %v418
        %v420 = vrot.slane %v400, 2
        %v421 = vsel %vm416, %v418, %v420
        %422 = vrot.lane.b32.xlu0 %v419, 120
        %v423 = vpop.permute.xlu0 %422
        %424 = vrot.lane.b32.xlu0 %v421, 120
        %v425 = vpop.permute.xlu0 %424
        %vm426 = vcmask 523264
        %v427 = vsel %vm426, %v423, 0
        %v429 = vsel %vm426, %v425, 0
        %431 = vmatpush.msra.mxu0 0.0
        %432 = vmatpush.msra.mxu0 0.0
        %433 = vmatpush.msra.mxu0 0.0
        %434 = vmatpush.msra.mxu0 0.0
        %435 = vmatpush.msra.mxu0 0.0
        %436 = vmatpush.msra.mxu0 0.0
        %437 = vmatpush.msra.mxu0 0.0
        %438 = vmatpush.msra.mxu0 0.0
        %439 = vmatpush.msra.mxu0 %v408
        %440 = vmatpush.msra.mxu0 %v407
        %441 = vmatpush.msra.mxu0 %v406
        %442 = vmatpush.msra.mxu0 %v405
        %443 = vmatpush.msra.mxu0 %v404
        %444 = vmatpush.msra.mxu0 %v403
        %445 = vmatpush.msra.mxu0 %v402
        %446 = vmatpush.msra.mxu0 %v401
        %447 = vmatmul.f32.gmra.mxu0 %v427
        %v448 = vpop.f32.mrf.mxu0
        %v449 = vadd.f32 %v411, %v448
        %450 = vmatmul.f32.gmra.mxu0 %v429
        %v451 = vpop.f32.mrf.mxu0
        %v452 = vadd.f32 %v411, %v451
        %453 = vdwg.mxu0
        %v454 = vmax.f32 %v449, 0.0
        %v455 = vmax.f32 %v452, 0.0
        %vm458 = vcmask 1040384
        %v459 = vrot.slane %v454, 7
        %v460 = vrot.slane %v455, 7
        %v461 = vsel %vm458, %v459, %v460
        %v464 = vsel %vm458, 0.0, %v459
        %v465 = vsel %vm458, %v460, 0.0
        %v466 = vld [vmem:[#allocation2] sm:$0xff]
        %v467 = vld [vmem:[#allocation2 + $0x8] sm:$0xff]
        %v468 = vld [vmem:[#allocation2 + $0x10] sm:$0xff]
        %v469 = vld [vmem:[#allocation2 + $0x18] sm:$0xff]
        %v470 = vld [vmem:[#allocation2 + $0x20] sm:$0xff]
        %v471 = vld [vmem:[#allocation2 + $0x28] sm:$0xff]
        %v472 = vld [vmem:[#allocation2 + $0x30] sm:$0xff]
        %v473 = vld [vmem:[#allocation2 + $0x38] sm:$0xff]
        %s474 = scalar_lea.vmem [#allocation2], 64
        %v475 = vld [vmem:[%s474] sm:$0xff]
        %v476 = vld [vmem:[%s474 + $0x8] sm:$0xff]
        %v477 = vld [vmem:[%s474 + $0x10] sm:$0xff]
        %v478 = vld [vmem:[%s474 + $0x18] sm:$0xff]
        %v479 = vld [vmem:[%s474 + $0x20] sm:$0xff]
        %v480 = vld [vmem:[%s474 + $0x28] sm:$0xff]
        %v481 = vld [vmem:[%s474 + $0x30] sm:$0xff]
        %v482 = vld [vmem:[%s474 + $0x38] sm:$0xff]
        %vm485 = vcmask 1046528
        %v486 = vrot.slane %v464, 1
        %v487 = vrot.slane %v461, 1
        %v488 = vsel %vm485, %v486, %v487
        %v489 = vrot.slane %v465, 1
        %v490 = vsel %vm485, %v487, %v489
        %v491 = vsel %vm426, %v488, 0
        %v493 = vsel %vm426, %v490, 0
        %495 = vmatpush.msra.mxu0 0.0
        %496 = vmatpush.msra.mxu0 0.0
        %497 = vmatpush.msra.mxu0 0.0
        %498 = vmatpush.msra.mxu0 0.0
        %499 = vmatpush.msra.mxu0 0.0
        %500 = vmatpush.msra.mxu0 0.0
        %501 = vmatpush.msra.mxu0 0.0
        %502 = vmatpush.msra.mxu0 0.0
        %503 = vmatpush.msra.mxu0 %v482
        %504 = vmatpush.msra.mxu0 %v481
        %505 = vmatpush.msra.mxu0 %v480
        %506 = vmatpush.msra.mxu0 %v479
        %507 = vmatpush.msra.mxu0 %v478
        %508 = vmatpush.msra.mxu0 %v477
        %509 = vmatpush.msra.mxu0 %v476
        %510 = vmatpush.msra.mxu0 %v475
        %511 = vmatmul.f32.gmra.mxu0 %v491
        %v512 = vpop.f32.mrf.mxu0
        %v513 = vadd.f32 0.0, %v512
        %514 = vmatmul.f32.gmra.mxu0 %v493
        %v515 = vpop.f32.mrf.mxu0
        %v516 = vadd.f32 0.0, %v515
        %517 = vdwg.mxu0
        %v518 = vsel %vm426, %v464, 0
        %v520 = vsel %vm426, %v461, 0
        %522 = vmatpush.msra.mxu0 0.0
        %523 = vmatpush.msra.mxu0 0.0
        %524 = vmatpush.msra.mxu0 0.0
        %525 = vmatpush.msra.mxu0 0.0
        %526 = vmatpush.msra.mxu0 0.0
        %527 = vmatpush.msra.mxu0 0.0
        %528 = vmatpush.msra.mxu0 0.0
        %529 = vmatpush.msra.mxu0 0.0
        %530 = vmatpush.msra.mxu0 %v473
        %531 = vmatpush.msra.mxu0 %v472
        %532 = vmatpush.msra.mxu0 %v471
        %533 = vmatpush.msra.mxu0 %v470
        %534 = vmatpush.msra.mxu0 %v469
        %535 = vmatpush.msra.mxu0 %v468
        %536 = vmatpush.msra.mxu0 %v467
        %537 = vmatpush.msra.mxu0 %v466
        %538 = vmatmul.f32.gmra.mxu0 %v518
        %v539 = vpop.f32.mrf.mxu0
        %v540 = vadd.f32 %v513, %v539
        %541 = vmatmul.f32.gmra.mxu0 %v520
        %v542 = vpop.f32.mrf.mxu0
        %v543 = vadd.f32 %v516, %v542
        %544 = vdwg.mxu0
        %s545 = scalar_lea.vmem [#allocation2], 128
        %v546 = vld [vmem:[%s545] sm:$0xff]
        %v547 = vld [vmem:[%s545 + $0x8] sm:$0xff]
        %v548 = vld [vmem:[%s545 + $0x10] sm:$0xff]
        %v549 = vld [vmem:[%s545 + $0x18] sm:$0xff]
        %v550 = vld [vmem:[%s545 + $0x20] sm:$0xff]
        %v551 = vld [vmem:[%s545 + $0x28] sm:$0xff]
        %v552 = vld [vmem:[%s545 + $0x30] sm:$0xff]
        %v553 = vld [vmem:[%s545 + $0x38] sm:$0xff]
        %v554 = vrot.slane %v464, 2
        %v555 = vrot.slane %v461, 2
        %v556 = vsel %vm416, %v554, %v555
        %v557 = vrot.slane %v465, 2
        %v558 = vsel %vm416, %v555, %v557
        %v559 = vsel %vm426, %v556, 0
        %v561 = vsel %vm426, %v558, 0
        %563 = vmatpush.msra.mxu0 0.0
        %564 = vmatpush.msra.mxu0 0.0
        %565 = vmatpush.msra.mxu0 0.0
        %566 = vmatpush.msra.mxu0 0.0
        %567 = vmatpush.msra.mxu0 0.0
        %568 = vmatpush.msra.mxu0 0.0
        %569 = vmatpush.msra.mxu0 0.0
        %570 = vmatpush.msra.mxu0 0.0
        %571 = vmatpush.msra.mxu0 %v553
        %572 = vmatpush.msra.mxu0 %v552
        %573 = vmatpush.msra.mxu0 %v551
        %574 = vmatpush.msra.mxu0 %v550
        %575 = vmatpush.msra.mxu0 %v549
        %576 = vmatpush.msra.mxu0 %v548
        %577 = vmatpush.msra.mxu0 %v547
        %578 = vmatpush.msra.mxu0 %v546
        %579 = vmatmul.f32.gmra.mxu0 %v559
        %v580 = vpop.f32.mrf.mxu0
        %v581 = vadd.f32 0.0, %v580
        %582 = vmatmul.f32.gmra.mxu0 %v561
        %v583 = vpop.f32.mrf.mxu0
        %v584 = vadd.f32 0.0, %v583
        %585 = vdwg.mxu0
        %v586 = vadd.f32 %v540, %v581
        %v587 = vadd.f32 %v543, %v584
        %v588 = vld [vmem:[%s4] sm:$0x1]
        %v590 = vperm.slane %v588, 0
        %v592 = vadd.f32 %v586, %v590
        %v593 = vadd.f32 %v587, %v590
        %v594 = vmax.f32 %v592, 0.0
        %v595 = vmax.f32 %v593, 0.0
        %v596 = vld [vmem:[#allocation5] sm:$0xff]
        %v597 = vld [vmem:[#allocation5 + $0x8] sm:$0xff]
        %v598 = vld [vmem:[#allocation5 + $0x10] sm:$0xff]
        %v599 = vld [vmem:[#allocation5 + $0x18] sm:$0xff]
        %v600 = vld [vmem:[#allocation5 + $0x20] sm:$0xff]
        %v601 = vld [vmem:[#allocation5 + $0x28] sm:$0xff]
        %v602 = vld [vmem:[#allocation5 + $0x30] sm:$0xff]
        %v603 = vld [vmem:[#allocation5 + $0x38] sm:$0xff]
        %v604 = vld [vmem:[#allocation5 + $0x40] sm:$0xff]
        %v605 = vld [vmem:[#allocation5 + $0x48] sm:$0xff]
        %v606 = vld [vmem:[#allocation5 + $0x50] sm:$0xff]
        %v607 = vld [vmem:[#allocation5 + $0x58] sm:$0xff]
        %v608 = vld [vmem:[#allocation5 + $0x60] sm:$0xff]
        %v609 = vld [vmem:[#allocation5 + $0x68] sm:$0xff]
        %v610 = vld [vmem:[#allocation5 + $0x70] sm:$0xff]
        %v611 = vld [vmem:[#allocation5 + $0x78] sm:$0xff]
        %v612 = vmul.f32 %v398, 0.27406862
        %v613 = vmul.f32 %v399, 0.27406862
        %v614 = vmul.f32 %v400, 0.27406862
        %v615 = vmul.f32 %v398, 0.45186275
        %v616 = vmul.f32 %v399, 0.45186275
        %v617 = vmul.f32 %v400, 0.45186275
        %621 = vrot.lane.b32.xlu0 %v615, 124
        %v622 = vpop.permute.xlu0 %621
        %623 = vrot.lane.b32.xlu0 %v616, 124
        %v624 = vpop.permute.xlu0 %623
        %625 = vrot.lane.b32.xlu0 %v617, 124
        %v626 = vpop.permute.xlu0 %625
        %v630 = vadd.f32 %v612, %v622
        %v631 = vadd.f32 %v613, %v624
        %v632 = vadd.f32 %v614, %v626
        %636 = vrot.lane.b32.xlu0 %v612, 120
        %v637 = vpop.permute.xlu0 %636
        %638 = vrot.lane.b32.xlu0 %v613, 120
        %v639 = vpop.permute.xlu0 %638
        %640 = vrot.lane.b32.xlu0 %v614, 120
        %v641 = vpop.permute.xlu0 %640
        %v645 = vadd.f32 %v630, %v637
        %v646 = vadd.f32 %v631, %v639
        %v647 = vadd.f32 %v632, %v641
        %v648 = vmul.f32 %v645, 0.27406862
        %v649 = vmul.f32 %v646, 0.27406862
        %v650 = vmul.f32 %v647, 0.27406862
        %v651 = vmul.f32 %v645, 0.45186275
        %v652 = vmul.f32 %v646, 0.45186275
        %v653 = vmul.f32 %v647, 0.45186275
        %v657 = vrot.slane %v651, 1
        %v658 = vrot.slane %v652, 1
        %v659 = vsel %vm485, %v657, %v658
        %v660 = vrot.slane %v653, 1
        %v661 = vsel %vm485, %v658, %v660
        %v665 = vadd.f32 %v648, %v659
        %v666 = vadd.f32 %v649, %v661
        %v667 = vadd.f32 %v650, %v660
        %v671 = vrot.slane %v648, 2
        %v672 = vrot.slane %v649, 2
        %v673 = vsel %vm416, %v671, %v672
        %v674 = vrot.slane %v650, 2
        %v675 = vsel %vm416, %v672, %v674
        %v679 = vadd.f32 %v665, %v673
        %v680 = vadd.f32 %v666, %v675
        %v681 = vadd.f32 %v667, %v674
        %v682 = vmul.f32 %v398, 0.054488685
        %v683 = vmul.f32 %v399, 0.054488685
        %v684 = vmul.f32 %v400, 0.054488685
        %v685 = vmul.f32 %v398, 0.24420135
        %v686 = vmul.f32 %v399, 0.24420135
        %v687 = vmul.f32 %v400, 0.24420135
        %691 = vrot.lane.b32.xlu0 %v685, 124
        %v692 = vpop.permute.xlu0 %691
        %693 = vrot.lane.b32.xlu0 %v686, 124
        %v694 = vpop.permute.xlu0 %693
        %695 = vrot.lane.b32.xlu0 %v687, 124
        %v696 = vpop.permute.xlu0 %695
        %v700 = vadd.f32 %v682, %v692
        %v701 = vadd.f32 %v683, %v694
        %v702 = vadd.f32 %v684, %v696
        %v703 = vmul.f32 %v398, 0.40261996
        %v704 = vmul.f32 %v399, 0.40261996
        %v705 = vmul.f32 %v400, 0.40261996
        %709 = vrot.lane.b32.xlu0 %v703, 120
        %v710 = vpop.permute.xlu0 %709
        %711 = vrot.lane.b32.xlu0 %v704, 120
        %v712 = vpop.permute.xlu0 %711
        %713 = vrot.lane.b32.xlu0 %v705, 120
        %v714 = vpop.permute.xlu0 %713
        %v718 = vadd.f32 %v700, %v710
        %v719 = vadd.f32 %v701, %v712
        %v720 = vadd.f32 %v702, %v714
        %721 = vrot.lane.b32.xlu0 %v685, 116
        %v722 = vpop.permute.xlu0 %721
        %723 = vrot.lane.b32.xlu0 %v686, 116
        %v724 = vpop.permute.xlu0 %723
        %725 = vrot.lane.b32.xlu0 %v687, 116
        %v726 = vpop.permute.xlu0 %725
        %v730 = vadd.f32 %v718, %v722
        %v731 = vadd.f32 %v719, %v724
        %v732 = vadd.f32 %v720, %v726
        %736 = vrot.lane.b32.xlu0 %v682, 112
        %v737 = vpop.permute.xlu0 %736
        %738 = vrot.lane.b32.xlu0 %v683, 112
        %v739 = vpop.permute.xlu0 %738
        %740 = vrot.lane.b32.xlu0 %v684, 112
        %v741 = vpop.permute.xlu0 %740
        %v745 = vadd.f32 %v730, %v737
        %v746 = vadd.f32 %v731, %v739
        %v747 = vadd.f32 %v732, %v741
        %v748 = vmul.f32 %v745, 0.054488685
        %v749 = vmul.f32 %v746, 0.054488685
        %v750 = vmul.f32 %v745, 0.24420135
        %v751 = vmul.f32 %v746, 0.24420135
        %v752 = vmul.f32 %v747, 0.24420135
        %v756 = vrot.slane %v750, 1
        %v757 = vrot.slane %v751, 1
        %v758 = vsel %vm485, %v756, %v757
        %v759 = vrot.slane %v752, 1
        %v760 = vsel %vm485, %v757, %v759
        %v763 = vadd.f32 %v748, %v758
        %v764 = vadd.f32 %v749, %v760
        %v765 = vmul.f32 %v745, 0.40261996
        %v766 = vmul.f32 %v746, 0.40261996
        %v767 = vmul.f32 %v747, 0.40261996
        %v771 = vrot.slane %v765, 2
        %v772 = vrot.slane %v766, 2
        %v773 = vsel %vm416, %v771, %v772
        %v774 = vrot.slane %v767, 2
        %v775 = vsel %vm416, %v772, %v774
        %v778 = vadd.f32 %v763, %v773
        %v779 = vadd.f32 %v764, %v775
        %vm780 = vcmask 1044480
        %v781 = vrot.slane %v750, 3
        %v782 = vrot.slane %v751, 3
        %v783 = vsel %vm780, %v781, %v782
        %v784 = vrot.slane %v752, 3
        %v785 = vsel %vm780, %v782, %v784
        %v788 = vadd.f32 %v778, %v783
        %v789 = vadd.f32 %v779, %v785
        %v790 = vmul.f32 %v747, 0.054488685
        %vm794 = vcmask 1043456
        %v795 = vrot.slane %v748, 4
        %v796 = vrot.slane %v749, 4
        %v797 = vsel %vm794, %v795, %v796
        %v798 = vrot.slane %v790, 4
        %v799 = vsel %vm794, %v796, %v798
        %v802 = vadd.f32 %v788, %v797
        %v803 = vadd.f32 %v789, %v799
        %vm806 = vcmask 1041408
        %v807 = vrot.slane %v802, 6
        %v808 = vrot.slane %v803, 6
        %v809 = vsel %vm806, %v807, %v808
        %810 = vrot.lane.b32.xlu0 %v807, 8
        %v811 = vpop.permute.xlu0 %810
        %812 = vrot.lane.b32.xlu0 %v809, 8
        %v813 = vpop.permute.xlu0 %812
        %814 = vrot.lane.b32.xlu0 %v808, 8
        %v815 = vpop.permute.xlu0 %814
        %v819 = vsub.f32 %v398, %v811
        %v820 = vsub.f32 %v399, %v813
        %v821 = vsub.f32 %v400, %v815
        %v822 = vld [vmem:[#allocation7] sm:$0xff]
        %v823 = vld [vmem:[#allocation7 + $0x8] sm:$0xff]
        %v824 = vld [vmem:[#allocation7 + $0x10] sm:$0xff]
        %v825 = vld [vmem:[#allocation7 + $0x18] sm:$0xff]
        %v826 = vld [vmem:[#allocation7 + $0x20] sm:$0xff]
        %v827 = vld [vmem:[#allocation7 + $0x28] sm:$0xff]
        %v828 = vld [vmem:[#allocation7 + $0x30] sm:$0xff]
        %v829 = vld [vmem:[#allocation7 + $0x38] sm:$0xff]
        %v830 = vld [vmem:[#allocation7 + $0x40] sm:$0xff]
        %v831 = vld [vmem:[#allocation7 + $0x48] sm:$0xff]
        %v832 = vld [vmem:[#allocation7 + $0x50] sm:$0xff]
        %v833 = vld [vmem:[#allocation7 + $0x58] sm:$0xff]
        %v834 = vld [vmem:[#allocation7 + $0x60] sm:$0xff]
        %v835 = vld [vmem:[#allocation7 + $0x68] sm:$0xff]
        %v836 = vld [vmem:[#allocation7 + $0x70] sm:$0xff]
        %v837 = vld [vmem:[#allocation7 + $0x78] sm:$0xff]
        %v838 = vld [vmem:[#allocation8] sm:$0xff]
        %v839 = vld [vmem:[#allocation8 + $0x8] sm:$0xff]
        %v840 = vld [vmem:[#allocation8 + $0x10] sm:$0xff]
        %v841 = vld [vmem:[#allocation8 + $0x18] sm:$0xff]
        %v842 = vld [vmem:[#allocation8 + $0x20] sm:$0xff]
        %v843 = vld [vmem:[#allocation8 + $0x28] sm:$0xff]
        %v844 = vld [vmem:[#allocation8 + $0x30] sm:$0xff]
        %v845 = vld [vmem:[#allocation8 + $0x38] sm:$0xff]
        %v846 = vld [vmem:[#allocation8 + $0x40] sm:$0xff]
        %v847 = vld [vmem:[#allocation8 + $0x48] sm:$0xff]
        %v848 = vld [vmem:[#allocation8 + $0x50] sm:$0xff]
        %v849 = vld [vmem:[#allocation8 + $0x58] sm:$0xff]
        %v850 = vld [vmem:[#allocation8 + $0x60] sm:$0xff]
        %v851 = vld [vmem:[#allocation8 + $0x68] sm:$0xff]
        %v852 = vld [vmem:[#allocation8 + $0x70] sm:$0xff]
        %v853 = vld [vmem:[#allocation8 + $0x78] sm:$0xff]
        %v857 = vrot.slane %v819, 2
        %v858 = vrot.slane %v820, 2
        %v859 = vsel %vm416, %v857, %v858
        %v860 = vrot.slane %v821, 2
        %v861 = vsel %vm416, %v858, %v860
        %862 = vrot.lane.b32.xlu0 %v859, 120
        %v863 = vpop.permute.xlu0 %862
        %864 = vrot.lane.b32.xlu0 %v861, 120
        %v865 = vpop.permute.xlu0 %864
        %v866 = vsel %vm426, %v863, 0
        %v868 = vsel %vm426, %v865, 0
        %870 = vmatpush.msra.mxu0 0.0
        %871 = vmatpush.msra.mxu0 0.0
        %872 = vmatpush.msra.mxu0 0.0
        %873 = vmatpush.msra.mxu0 0.0
        %874 = vmatpush.msra.mxu0 0.0
        %875 = vmatpush.msra.mxu0 0.0
        %876 = vmatpush.msra.mxu0 0.0
        %877 = vmatpush.msra.mxu0 0.0
        %878 = vmatpush.msra.mxu0 %v852
        %879 = vmatpush.msra.mxu0 %v850
        %880 = vmatpush.msra.mxu0 %v848
        %881 = vmatpush.msra.mxu0 %v846
        %882 = vmatpush.msra.mxu0 %v844
        %883 = vmatpush.msra.mxu0 %v842
        %884 = vmatpush.msra.mxu0 %v840
        %885 = vmatpush.msra.mxu0 %v838
        %886 = vmatmul.f32.gmra.mxu0 %v866
        %v887 = vpop.f32.mrf.mxu0
        %v888 = vadd.f32 0.0, %v887
        %889 = vmatmul.f32.gmra.mxu0 %v868
        %v890 = vpop.f32.mrf.mxu0
        %v891 = vadd.f32 0.0, %v890
        %892 = vdwg.mxu0
        %893 = vmatpush.msra.mxu0 0.0
        %894 = vmatpush.msra.mxu0 0.0
        %895 = vmatpush.msra.mxu0 0.0
        %896 = vmatpush.msra.mxu0 0.0
        %897 = vmatpush.msra.mxu0 0.0
        %898 = vmatpush.msra.mxu0 0.0
        %899 = vmatpush.msra.mxu0 0.0
        %900 = vmatpush.msra.mxu0 0.0
        %901 = vmatpush.msra.mxu0 %v853
        %902 = vmatpush.msra.mxu0 %v851
        %903 = vmatpush.msra.mxu0 %v849
        %904 = vmatpush.msra.mxu0 %v847
        %905 = vmatpush.msra.mxu0 %v845
        %906 = vmatpush.msra.mxu0 %v843
        %907 = vmatpush.msra.mxu0 %v841
        %908 = vmatpush.msra.mxu0 %v839
        %909 = vmatmul.f32.gmra.mxu0 %v866
        %v910 = vpop.f32.mrf.mxu0
        %v911 = vadd.f32 0.0, %v910
        %912 = vmatmul.f32.gmra.mxu0 %v868
        %v913 = vpop.f32.mrf.mxu0
        %v914 = vadd.f32 0.0, %v913
        %915 = vdwg.mxu0
        %v919 = vrot.slane %v679, 1
        %v920 = vrot.slane %v680, 1
        %v921 = vsel %vm485, %v919, %v920
        %v922 = vrot.slane %v681, 1
        %v923 = vsel %vm485, %v920, %v922
        %924 = vrot.lane.b32.xlu0 %v921, 124
        %v925 = vpop.permute.xlu0 %924
        %926 = vrot.lane.b32.xlu0 %v923, 124
        %v927 = vpop.permute.xlu0 %926
        %v928 = vsel %vm426, %v925, 0
        %v930 = vsel %vm426, %v927, 0
        %932 = vmatpush.msra.mxu0 0.0
        %933 = vmatpush.msra.mxu0 0.0
        %934 = vmatpush.msra.mxu0 0.0
        %935 = vmatpush.msra.mxu0 0.0
        %936 = vmatpush.msra.mxu0 0.0
        %937 = vmatpush.msra.mxu0 0.0
        %938 = vmatpush.msra.mxu0 0.0
        %939 = vmatpush.msra.mxu0 0.0
        %940 = vmatpush.msra.mxu0 %v836
        %941 = vmatpush.msra.mxu0 %v834
        %942 = vmatpush.msra.mxu0 %v832
        %943 = vmatpush.msra.mxu0 %v830
        %944 = vmatpush.msra.mxu0 %v828
        %945 = vmatpush.msra.mxu0 %v826
        %946 = vmatpush.msra.mxu0 %v824
        %947 = vmatpush.msra.mxu0 %v822
        %948 = vmatmul.f32.gmra.mxu0 %v928
        %v949 = vpop.f32.mrf.mxu0
        %v950 = vadd.f32 %v888, %v949
        %951 = vmatmul.f32.gmra.mxu0 %v930
        %v952 = vpop.f32.mrf.mxu0
        %v953 = vadd.f32 %v891, %v952
        %954 = vdwg.mxu0
        %955 = vmatpush.msra.mxu0 0.0
        %956 = vmatpush.msra.mxu0 0.0
        %957 = vmatpush.msra.mxu0 0.0
        %958 = vmatpush.msra.mxu0 0.0
        %959 = vmatpush.msra.mxu0 0.0
        %960 = vmatpush.msra.mxu0 0.0
        %961 = vmatpush.msra.mxu0 0.0
        %962 = vmatpush.msra.mxu0 0.0
        %963 = vmatpush.msra.mxu0 %v837
        %964 = vmatpush.msra.mxu0 %v835
        %965 = vmatpush.msra.mxu0 %v833
        %966 = vmatpush.msra.mxu0 %v831
        %967 = vmatpush.msra.mxu0 %v829
        %968 = vmatpush.msra.mxu0 %v827
        %969 = vmatpush.msra.mxu0 %v825
        %970 = vmatpush.msra.mxu0 %v823
        %971 = vmatmul.f32.gmra.mxu0 %v928
        %v972 = vpop.f32.mrf.mxu0
        %v973 = vadd.f32 %v911, %v972
        %974 = vmatmul.f32.gmra.mxu0 %v930
        %v975 = vpop.f32.mrf.mxu0
        %v976 = vadd.f32 %v914, %v975
        %977 = vdwg.mxu0
        %v979 = vsel %vm426, %v594, 0
        %v982 = vsel %vm426, %v595, 0
        %984 = vmatpush.msra.mxu0 0.0
        %985 = vmatpush.msra.mxu0 0.0
        %986 = vmatpush.msra.mxu0 0.0
        %987 = vmatpush.msra.mxu0 0.0
        %988 = vmatpush.msra.mxu0 0.0
        %989 = vmatpush.msra.mxu0 0.0
        %990 = vmatpush.msra.mxu0 0.0
        %991 = vmatpush.msra.mxu0 0.0
        %992 = vmatpush.msra.mxu0 %v610
        %993 = vmatpush.msra.mxu0 %v608
        %994 = vmatpush.msra.mxu0 %v606
        %995 = vmatpush.msra.mxu0 %v604
        %996 = vmatpush.msra.mxu0 %v602
        %997 = vmatpush.msra.mxu0 %v600
        %998 = vmatpush.msra.mxu0 %v598
        %999 = vmatpush.msra.mxu0 %v596
        %1000 = vmatmul.f32.gmra.mxu0 %v979
        %v1001 = vpop.f32.mrf.mxu0
        %v1002 = vadd.f32 %v950, %v1001
        %1003 = vmatmul.f32.gmra.mxu0 %v982
        %v1004 = vpop.f32.mrf.mxu0
        %v1005 = vadd.f32 %v953, %v1004
        %1006 = vdwg.mxu0
        %1007 = vmatpush.msra.mxu0 0.0
        %1008 = vmatpush.msra.mxu0 0.0
        %1009 = vmatpush.msra.mxu0 0.0
        %1010 = vmatpush.msra.mxu0 0.0
        %1011 = vmatpush.msra.mxu0 0.0
        %1012 = vmatpush.msra.mxu0 0.0
        %1013 = vmatpush.msra.mxu0 0.0
        %1014 = vmatpush.msra.mxu0 0.0
        %1015 = vmatpush.msra.mxu0 %v611
        %1016 = vmatpush.msra.mxu0 %v609
        %1017 = vmatpush.msra.mxu0 %v607
        %1018 = vmatpush.msra.mxu0 %v605
        %1019 = vmatpush.msra.mxu0 %v603
        %1020 = vmatpush.msra.mxu0 %v601
        %1021 = vmatpush.msra.mxu0 %v599
        %1022 = vmatpush.msra.mxu0 %v597
        %1023 = vmatmul.f32.gmra.mxu0 %v979
        %v1024 = vpop.f32.mrf.mxu0
        %v1025 = vadd.f32 %v973, %v1024
        %1026 = vmatmul.f32.gmra.mxu0 %v982
        %v1027 = vpop.f32.mrf.mxu0
        %v1028 = vadd.f32 %v976, %v1027
        %1029 = vdwg.mxu0
        %v1030 = vld [vmem:[%s8] sm:$0x3]
        %v1032 = vperm.slane %v1030, 0
        %v1033 = vperm.slane %v1030, 1
        %v1036 = vadd.f32 %v1002, %v1032
        %v1037 = vadd.f32 %v1025, %v1033
        %v1038 = vadd.f32 %v1005, %v1032
        %v1039 = vadd.f32 %v1028, %v1033
        %v1040 = vmax.f32 %v1036, 0.0
        %v1041 = vmax.f32 %v1037, 0.0
        %v1042 = vmax.f32 %v1038, 0.0
        %v1043 = vmax.f32 %v1039, 0.0
        %1044 = vst [vmem:[%s392] sm:$0xff] %v1040
        %1045 = vst [vmem:[%s392 + $0x8] sm:$0xff] %v1041
        %1046 = vst [vmem:[%s392 + $0x10] sm:$0xff] %v1042
        %1047 = vst [vmem:[%s392 + $0x18] sm:$0xff] %v1043
        %s1048 = sand.u32 %s228, 1
        %s1049 = scalar_lea.sflag [#allocation4], %s1048
        %s1050 = sand.u32 %s228, 1
        %s1051 = smul.addr %s1050, 32
        %s1052 = scalar_lea.vmem [#allocation10], %s1051
        // Predicated region
        $region73: #{tpu_custom_call.1} parent=55 // pred_check
          %p1053 = pneg %p238
        $region74: #{tpu_custom_call.1} parent=55 // pred_check_branch
          %1055 = sbr.rel (%p1053) target = $region76
        $region75: #{tpu_custom_call.1} parent=55 // pred_region
          %1057 = vsyncadd %s1049, 0
          %s1058 = smul.addr %s26, 4
          %s1059 = smul.addr %s1058, 8
          %s1060 = scalar_lea.hbm %s9, %s1059
          %s1061 = sshll.u32 %s1052, 4
          %s1062 = int_to_ptr.vmem [resolvable:$true] %s1061
          %s1063 = sshll.u32 %s1060, 4
          %s1064 = int_to_ptr.hbm [resolvable:$true] %s1063
          %1069 = dma.vmem_to_hbm [thread:$0]  %s1062, 512, %s1064, %s1049, 256, 256, 16
        $region76: #{tpu_custom_call.1} parent=55 // pred_fallthru
          _
      $region56: #{tpu_custom_call.1} parent=5 // pred_fallthru
        _
      %p1070 = scmp.le.s32.totalorder 2, %s21
      // Predicated region
      $region77: #{tpu_custom_call.1} parent=5 // pred_check
        %p1071 = pneg %p1070
      $region78: #{tpu_custom_call.1} parent=5 // pred_check_branch
        %1073 = sbr.rel (%p1071) target = $region80
      $region79: #{tpu_custom_call.1} parent=5 // pred_region
        %s1074 = ssub.s32 %s21, 2
        // Predicated region
        $region81: #{tpu_custom_call.1} parent=79 // pred_check
          %p1075 = pneg %p244
        $region82: #{tpu_custom_call.1} parent=79 // pred_check_branch
          %1077 = sbr.rel (%p1075) target = $region84
        $region83: #{tpu_custom_call.1} parent=79 // pred_region
          %s1078 = sand.u32 %s229, 1
          %s1079 = scalar_lea.sflag [#allocation4], %s1078
          %s1080 = sand.u32 %s229, 1
          %s1081 = smul.addr %s1080, 32
          %s1082 = scalar_lea.vmem [#allocation10], %s1081
          %1084 = dma.done %s1079, 512
        $region84: #{tpu_custom_call.1} parent=79 // pred_fallthru
          _
      $region80: #{tpu_custom_call.1} parent=5 // pred_fallthru
        _
    $region6: #{tpu_custom_call.1} parent=1 // loop_footer
      %s25 = sadd.s32 1, %s21
    $region7: #{tpu_custom_call.1} parent=1 // loop_footer_branch
      %20 = sbr.rel target = $region3
    $region8: #{tpu_custom_call.1} parent=1 // loop_exit
      _
    %1085 = vsyncpa [#allocation3], 1
    %s1086 = scalar_lea.sflag [#allocation3], 1
    %1087 = vsyncpa %s1086, 1
    %1088 = vsyncpa [#allocation6], 1
    %1089 = vsyncpa [#allocation9], 1
    %1090 = vsyncpa [#allocation4], 1
    %s1091 = scalar_lea.sflag [#allocation4], 1
    %1092 = vsyncpa %s1091, 1

</llo_original>
